<compile_context>
chip_gen: v5e
topology: v5e:2x2
jax: 0.10.0
libtpu: 0.0.40
codegen_flags: <defaults>
</compile_context>

<pallas_src>
import functools

import jax
import jax.numpy as jnp
from jax.experimental import pallas as pl
from jax.experimental.pallas import tpu as pltpu


_VMEM_LIMIT = 48 * 1024 * 1024  # fits v5e/v6e/v7x; >> what the tiles need


# ---------------------------------------------------------------------------
# Kernels
# ---------------------------------------------------------------------------
def _linear_kernel(apply_relu, x_ref, w_ref, b_ref, o_ref):
    """One row-tile of y = x @ w + b (w already [in, out])."""
    y = jnp.dot(x_ref[...], w_ref[...], preferred_element_type=jnp.float32)
    y = y + b_ref[...]
    if apply_relu:
        y = jnp.maximum(y, 0.0)
    o_ref[...] = y.astype(o_ref.dtype)


def _gcn_layer_kernel(last, a_ref, h_ref, w_ref, b_ref, *rest):
    """Row-tile of relu((A_hat @ h) @ W + b); reduction over source tiles.

    Reassociation of A_hat @ (h @ W): the accumulator holds A_hat @ h; the
    W matmul (and, for the last layer, the decoder) happens once in finalize.
    """
    if last:
        wd_ref, bd_ref, o_ref, acc_ref = rest
    else:
        o_ref, acc_ref = rest

    k = pl.program_id(1)

    @pl.when(k == 0)
    def _():
        acc_ref[...] = jnp.zeros_like(acc_ref)

    acc_ref[...] += jnp.dot(a_ref[...], h_ref[...],
                            preferred_element_type=jnp.float32)

    @pl.when(k == pl.num_programs(1) - 1)
    def _():
        ah = acc_ref[...].astype(jnp.bfloat16)
        hw = jnp.dot(ah, w_ref[...], preferred_element_type=jnp.float32)
        h_new = jnp.maximum(hw + b_ref[...], 0.0)
        if last:
            y = jnp.dot(h_new.astype(jnp.bfloat16), wd_ref[...],
                        preferred_element_type=jnp.float32) + bd_ref[...]
            o_ref[...] = y.astype(o_ref.dtype)
        else:
            o_ref[...] = h_new.astype(o_ref.dtype)


# ---------------------------------------------------------------------------
# pallas_call wrappers
# ---------------------------------------------------------------------------
def _round_up(x, m):
    return (x + m - 1) // m * m


def _pad2(a, rows, cols):
    return jnp.pad(a, ((0, rows - a.shape[0]), (0, cols - a.shape[1])))


def _choose_node_tiling(n_nodes, max_tile):
    """Pad N to a 128 multiple, pick the largest tile <= max_tile minimizing
    extra padding (decouples node padding from the tile size)."""
    base = _round_up(n_nodes, 128)
    best = None
    for t in (1024, 768, 512, 384, 256, 128):
        if t > max_tile or t > base:
            continue
        padded = _round_up(base, t)
        key = (padded, -t)  # minimal padding first, then larger tile
        if best is None or key < best[0]:
            best = (key, padded, t)
    if best is None:  # max_tile < 128: fall back to a single full-size tile
        return base, base
    return best[1], best[2]


def _linear_pallas(x, w, b, *, relu, out_dtype, tm):
    """x:[N_pad, IN] bf16, w:[IN, OUT] bf16, b:[1, OUT] f32 -> [N_pad, OUT]."""
    n_pad, f_in = x.shape
    f_out = w.shape[1]
    kernel = functools.partial(_linear_kernel, relu)
    return pl.pallas_call(
        kernel,
        out_shape=jax.ShapeDtypeStruct((n_pad, f_out), out_dtype),
        grid=(n_pad // tm,),
        in_specs=[
            pl.BlockSpec((tm, f_in), lambda i: (i, 0)),
            pl.BlockSpec((f_in, f_out), lambda i: (0, 0)),
            pl.BlockSpec((1, f_out), lambda i: (0, 0)),
        ],
        out_specs=pl.BlockSpec((tm, f_out), lambda i: (i, 0)),
        compiler_params=pltpu.CompilerParams(
            dimension_semantics=("parallel",),
            vmem_limit_bytes=_VMEM_LIMIT),
    )(x, w, b)


def _gcn_layer_pallas(a_hat, h, w, b, *, tm, tk, wd=None, bd=None):
    """relu((A_hat @ h) @ W + b); optionally fused with decoder (wd/bd given)."""
    n_pad = a_hat.shape[0]
    h_dim = w.shape[1]

    if wd is None:
        last = False
        out_dim, out_dtype = h_dim, jnp.bfloat16
        extra_args, extra_specs = (), ()
        extra_flops = 0
    else:
        last = True
        out_dim, out_dtype = wd.shape[1], jnp.float32
        extra_args = (wd, bd)
        extra_specs = (
            pl.BlockSpec((h_dim, out_dim), lambda i, k: (0, 0)),
            pl.BlockSpec((1, out_dim), lambda i, k: (0, 0)),
        )
        extra_flops = 2 * n_pad * h_dim * out_dim

    kernel = functools.partial(_gcn_layer_kernel, last)

    n_row_tiles = n_pad // tm
    out_bytes = 2 if out_dtype == jnp.bfloat16 else 4
    cost = pl.CostEstimate(
        flops=(2 * n_pad * n_pad * h_dim          # A_hat @ h
               + 2 * n_pad * h_dim * h_dim        # (A_hat @ h) @ W
               + extra_flops),
        transcendentals=0,
        bytes_accessed=(a_hat.size * a_hat.dtype.itemsize
                        + h.size * h.dtype.itemsize * n_row_tiles
                        + n_pad * out_dim * out_bytes),
    )

    return pl.pallas_call(
        kernel,
        out_shape=jax.ShapeDtypeStruct((n_pad, out_dim), out_dtype),
        grid=(n_pad // tm, n_pad // tk),
        in_specs=[
            pl.BlockSpec((tm, tk), lambda i, k: (i, k)),
            pl.BlockSpec((tk, h_dim), lambda i, k: (k, 0)),
            pl.BlockSpec((h_dim, h_dim), lambda i, k: (0, 0)),
            pl.BlockSpec((1, h_dim), lambda i, k: (0, 0)),
            *extra_specs,
        ],
        out_specs=pl.BlockSpec((tm, out_dim), lambda i, k: (i, 0)),
        scratch_shapes=[pltpu.VMEM((tm, h_dim), jnp.float32)],
        compiler_params=pltpu.CompilerParams(
            dimension_semantics=("parallel", "arbitrary"),
            vmem_limit_bytes=_VMEM_LIMIT),
        cost_estimate=cost,
    )(a_hat, h, w, b, *extra_args)


# ---------------------------------------------------------------------------
# Forward pass
# ---------------------------------------------------------------------------
def vanilla_gnn_forward(x, a_hat, params, nlayers, *, tile_m=1024, tile_k=1024):
    n_nodes, nfeat = x.shape
    nhid = params["we"].shape[0]
    nclass = params["wd"].shape[0]

    # Node padding decoupled from tile size (tiles clamped to the padded N).
    n_pad, tm = _choose_node_tiling(n_nodes, tile_m)
    tk = min(tile_k, tm)
    f_pad = _round_up(nfeat, 128)
    h_pad = _round_up(nhid, 128)
    c_pad = _round_up(nclass, 128)

    # One-time host-side preprocessing: pad to lane-dense shapes, pre-transpose
    # weights to [in, out], cast MXU operands to bf16, keep biases in f32.
    xp = _pad2(x, n_pad, f_pad).astype(jnp.bfloat16)
    ap = _pad2(a_hat, n_pad, n_pad).astype(jnp.bfloat16)
    we = _pad2(params["we"].T, f_pad, h_pad).astype(jnp.bfloat16)
    be = _pad2(params["be"], 1, h_pad).astype(jnp.float32)
    wc = (jnp.stack([_pad2(params["wc"][l].T, h_pad, h_pad) for l in range(nlayers)])
          .astype(jnp.bfloat16) if nlayers > 0 else None)
    bc = (jnp.stack([_pad2(params["bc"][l], 1, h_pad) for l in range(nlayers)])
          .astype(jnp.float32) if nlayers > 0 else None)
    wd = _pad2(params["wd"].T, h_pad, c_pad).astype(jnp.bfloat16)
    bd = _pad2(params["bd"], 1, c_pad).astype(jnp.float32)

    # Encoder: h = relu(x @ We + be)
    h = _linear_pallas(xp, we, be, relu=True, out_dtype=jnp.bfloat16, tm=tm)

    if nlayers == 0:
        out = _linear_pallas(h, wd, bd, relu=False, out_dtype=jnp.float32, tm=tm)
        return out[:n_nodes, :nclass]

    # GCN layers: h = relu((A_hat @ h) @ Wl + bl); decoder fused into the last.
    for l in range(nlayers):
        is_last = (l == nlayers - 1)
        h = _gcn_layer_pallas(ap, h, wc[l], bc[l], tm=tm, tk=tk,
                              wd=wd if is_last else None,
                              bd=bd if is_last else None)

    return h[:n_nodes, :nclass]


# ---------------------------------------------------------------------------
# Host-side graph preprocessing & reference
# ---------------------------------------------------------------------------
def gcn_norm_dense(edge_index, n_nodes):
    """Dense D^{-1/2} (A + I) D^{-1/2}; rows=targets, cols=sources (PyG GCNConv)."""
    # TODO(synk): PyG's gcn_norm sums duplicate edges; .set collapses them to 1.
    src, dst = edge_index[0], edge_index[1]
    adj = jnp.zeros((n_nodes, n_nodes), jnp.float32).at[dst, src].set(1.0)
    adj = jnp.maximum(adj, jnp.eye(n_nodes, dtype=jnp.float32))  # add self loops
    deg = adj.sum(axis=1)
    d_inv_sqrt = jnp.where(deg > 0, 1.0 / jnp.sqrt(deg), 0.0)
    return d_inv_sqrt[:, None] * adj * d_inv_sqrt[None, :]


def init_params(key, nfeat, nhid, nclass, nlayers):
    ks = jax.random.split(key, 6)
    scale = 0.1
    return {
        "we": scale * jax.random.normal(ks[0], (nhid, nfeat), jnp.float32),
        "be": scale * jax.random.normal(ks[1], (1, nhid), jnp.float32),
        "wc": scale * jax.random.normal(ks[2], (nlayers, nhid, nhid), jnp.float32),
        "bc": scale * jax.random.normal(ks[3], (nlayers, 1, nhid), jnp.float32),
        "wd": scale * jax.random.normal(ks[4], (nclass, nhid), jnp.float32),
        "bd": scale * jax.random.normal(ks[5], (1, nclass), jnp.float32),
    }


def vanilla_gnn_reference(x, a_hat, params, nlayers):
    h = jnp.maximum(x @ params["we"].T + params["be"], 0.0)
    for l in range(nlayers):
        h = jnp.maximum(a_hat @ (h @ params["wc"][l].T) + params["bc"][l], 0.0)
    return h @ params["wd"].T + params["bd"]


if __name__ == "__main__":
    # Small, deterministic synthetic graph.
    n_nodes, nfeat, nhid, nclass, nlayers, n_edges = 64, 16, 32, 8, 2, 256

    key = jax.random.PRNGKey(0)
    k_x, k_e, k_p = jax.random.split(key, 3)

    x = jax.random.normal(k_x, (n_nodes, nfeat), jnp.float32)
    edge_index = jax.random.randint(k_e, (2, n_edges), 0, n_nodes, jnp.int32)

    a_hat = gcn_norm_dense(edge_index, n_nodes)
    params = init_params(k_p, nfeat, nhid, nclass, nlayers)

    out = vanilla_gnn_forward(x, a_hat, params, nlayers)
    jax.block_until_ready(out)
    assert out.shape == (n_nodes, nclass)

    ref = vanilla_gnn_reference(x, a_hat, params, nlayers)
    max_err = float(jnp.max(jnp.abs(out - ref)))
    assert max_err < 3e-2, f"max abs error {max_err}"

    print("KERNEL_OK")
</pallas_src>

<mosaic_0001>
module attributes {stable_mosaic.version = 11 : i64} {
  func.func @_linear_kernel(%arg0: i32, %arg1: memref<128x128xbf16, #tpu.memory_space<vmem>>, %arg2: memref<128x128xbf16, #tpu.memory_space<vmem>>, %arg3: memref<1x128xf32, #tpu.memory_space<vmem>>, %arg4: memref<128x128xbf16, #tpu.memory_space<vmem>>) attributes {dimension_semantics = [#tpu.dimension_semantics<parallel>], iteration_bounds = array<i64: 1>, scalar_prefetch = 0 : i64, scratch_operands = 0 : i64, tpu.core_type = #tpu.core_type<tc>, window_params = [{transform_indices = @transform_0, window_bounds = array<i64: 128, 128>}, {pipeline_mode = #tpu.pipeline_mode<synchronous>, transform_indices = @transform_1, window_bounds = array<i64: 128, 128>}, {pipeline_mode = #tpu.pipeline_mode<synchronous>, transform_indices = @transform_2, window_bounds = array<i64: 1, 128>}, {transform_indices = @transform_3, window_bounds = array<i64: 128, 128>}]} {
    %c0 = arith.constant 0 : index
    %c0_0 = arith.constant 0 : index
    %0 = vector.load %arg1[%c0, %c0_0] : memref<128x128xbf16, #tpu.memory_space<vmem>>, vector<128x128xbf16>
    %c0_1 = arith.constant 0 : index
    %c0_2 = arith.constant 0 : index
    %1 = vector.load %arg2[%c0_1, %c0_2] : memref<128x128xbf16, #tpu.memory_space<vmem>>, vector<128x128xbf16>
    %cst = arith.constant dense<0.000000e+00> : vector<128x128xf32>
    %2 = tpu.matmul %0, %1, %cst {dimension_numbers = #tpu.dot_dimension_numbers<[1], [0], [0], [1], [0, 0, 1, 1], [], []>} : vector<128x128xbf16>, vector<128x128xbf16>, vector<128x128xf32> -> vector<128x128xf32>
    %c0_3 = arith.constant 0 : index
    %c0_4 = arith.constant 0 : index
    %3 = vector.load %arg3[%c0_3, %c0_4] : memref<1x128xf32, #tpu.memory_space<vmem>>, vector<1x128xf32>
    %4 = vector.broadcast %3 : vector<1x128xf32> to vector<128x128xf32>
    %5 = arith.addf %2, %4 : vector<128x128xf32>
    %cst_5 = arith.constant 0.000000e+00 : f32
    %6 = vector.broadcast %cst_5 : f32 to vector<128x128xf32>
    %7 = arith.maximumf %5, %6 : vector<128x128xf32>
    %8 = arith.truncf %7 : vector<128x128xf32> to vector<128x128xbf16>
    %c0_6 = arith.constant 0 : index
    %c0_7 = arith.constant 0 : index
    %9 = vector.load %arg4[%c0_6, %c0_7] : memref<128x128xbf16, #tpu.memory_space<vmem>>, vector<128x128xbf16>
    tpu.vector_store %arg4[%c0_6, %c0_7], %8 {strides = array<i32>} : memref<128x128xbf16, #tpu.memory_space<vmem>>, vector<128x128xbf16>,
    return
  }
  func.func @transform_0(%arg0: i32) -> (i32, i32) {
    %c0_i32 = arith.constant 0 : i32
    %c0_i32_0 = arith.constant 0 : i32
    return %arg0, %c0_i32 : i32, i32
  }
  func.func @transform_1(%arg0: i32) -> (i32, i32) {
    %c0_i32 = arith.constant 0 : i32
    %c0_i32_0 = arith.constant 0 : i32
    %c0_i32_1 = arith.constant 0 : i32
    return %c0_i32, %c0_i32_0 : i32, i32
  }
  func.func @transform_2(%arg0: i32) -> (i32, i32) {
    %c0_i32 = arith.constant 0 : i32
    %c0_i32_0 = arith.constant 0 : i32
    %c0_i32_1 = arith.constant 0 : i32
    return %c0_i32, %c0_i32_0 : i32, i32
  }
  func.func @transform_3(%arg0: i32) -> (i32, i32) {
    %c0_i32 = arith.constant 0 : i32
    %c0_i32_0 = arith.constant 0 : i32
    return %arg0, %c0_i32 : i32, i32
  }
}

</mosaic_0001>

<llo_original>
// kernel: tpu_custom_call.1
$region0: #{tpu_custom_call.1}
  #allocation0 [shape = 'u32[]', space=smem, size = 0x4, offset = 0x4, fixed_abs, tag = 'smem constant byte address 0x4 - core index']
  #allocation1 [shape = 'u32[72,128]{1,0:T(1,128)}', space=vmem, size = 0x9000, scoped, tag = 'internal scratch']
  %s0 = inlined_call_operand.hbm [shape: bf16[128,128], index: 0, kind: input, shape index: {}]
  %s1 = inlined_call_operand.hbm [shape: bf16[128,128], index: 1, kind: input, shape index: {}]
  %s2 = inlined_call_operand.vmem [shape: f32[1,128], index: 2, kind: input, shape index: {}]
  %s3 = inlined_call_operand.hbm [shape: bf16[128,128], index: 3, kind: output, shape index: {}]
  %s4 = sld [smem:[#allocation0]]
  $region30: #{tpu_custom_call.1} parent=0
    _
  %s6 = ssub.s32 1, %s4
  %s7 = scalar_select 0, %s6, %s4
  $region1: #{tpu_custom_call.1} parent=0
    #allocation2 [shape = 'u8[32768]{0}', space=vmem, size = 0x8000, scoped, tag = 'input window, operand 0, single buffered']
    #allocation3 [shape = 's32[1]{0}', space=sflag, size = 0x4, scoped, tag = 'scoped memory for tpu_custom_call.1']
    #allocation4 [shape = 's32[1]{0}', space=sflag, size = 0x4, scoped, tag = 'scoped memory for tpu_custom_call.1']
    #allocation5 [shape = 'u8[32768]{0}', space=vmem, size = 0x8000, scoped, tag = 'input window, operand 1, single buffered']
    #allocation6 [shape = 's32[1]{0}', space=sflag, size = 0x4, scoped, tag = 'scoped memory for tpu_custom_call.1']
    #allocation7 [shape = 'u8[32768]{0}', space=vmem, size = 0x8000, scoped, tag = 'output window, operand 0, single buffered']
    %8 = vsyncpa [#allocation3], 0
    %9 = vsyncpa [#allocation6], 0
    %10 = vsyncpa [#allocation4], 0
    // Predicated region
    $region2: #{tpu_custom_call.1} parent=1 // pred_check
      _
    $region3: #{tpu_custom_call.1} parent=1 // pred_check_branch
      %12 = sbr.rel (0) target = $region5
    $region4: #{tpu_custom_call.1} parent=1 // pred_region
      %14 = vsyncadd [#allocation3], 0
      %s15 = sshll.u32 %s0, 4
      %s16 = int_to_ptr.hbm [resolvable:$true] %s15
      %s17 = sshll.u32 [#allocation2], 4
      %s18 = int_to_ptr.vmem [resolvable:$true] %s17
      %23 = dma.hbm_to_vmem [thread:$0]  %s16, 1024, %s18, [#allocation3], 64, 64, 4
    $region5: #{tpu_custom_call.1} parent=1 // pred_fallthru
      _
    // Predicated region
    $region6: #{tpu_custom_call.1} parent=1 // pred_check
      _
    $region7: #{tpu_custom_call.1} parent=1 // pred_check_branch
      %25 = sbr.rel (0) target = $region9
    $region8: #{tpu_custom_call.1} parent=1 // pred_region
      %27 = vsyncadd [#allocation6], 0
      %s28 = sshll.u32 %s1, 4
      %s29 = int_to_ptr.hbm [resolvable:$true] %s28
      %s30 = sshll.u32 [#allocation5], 4
      %s31 = int_to_ptr.vmem [resolvable:$true] %s30
      %36 = dma.hbm_to_vmem [thread:$0]  %s29, 1024, %s31, [#allocation6], 64, 64, 4
    $region9: #{tpu_custom_call.1} parent=1 // pred_fallthru
      _
    // Predicated region
    $region10: #{tpu_custom_call.1} parent=1 // pred_check
      _
    $region11: #{tpu_custom_call.1} parent=1 // pred_check_branch
      %38 = sbr.rel (0) target = $region13
    $region12: #{tpu_custom_call.1} parent=1 // pred_region
      _
    $region13: #{tpu_custom_call.1} parent=1 // pred_fallthru
      _
    // Predicated region
    $region14: #{tpu_custom_call.1} parent=1 // pred_check
      _
    $region15: #{tpu_custom_call.1} parent=1 // pred_check_branch
      %40 = sbr.rel (0) target = $region17
    $region16: #{tpu_custom_call.1} parent=1 // pred_region
      %42 = dma.done [#allocation3], 1024
    $region17: #{tpu_custom_call.1} parent=1 // pred_fallthru
      _
    // Predicated region
    $region18: #{tpu_custom_call.1} parent=1 // pred_check
      _
    $region19: #{tpu_custom_call.1} parent=1 // pred_check_branch
      %44 = sbr.rel (0) target = $region21
    $region20: #{tpu_custom_call.1} parent=1 // pred_region
      %46 = dma.done [#allocation6], 1024
    $region21: #{tpu_custom_call.1} parent=1 // pred_fallthru
      _
    %v47 = vld [vmem:[#allocation2] sm:$0xf]
    %v48 = vld [vmem:[#allocation2 + $0x4] sm:$0xf]
    %v49 = vld [vmem:[#allocation2 + $0x8] sm:$0xf]
    %v50 = vld [vmem:[#allocation2 + $0xc] sm:$0xf]
    %v51 = vld [vmem:[#allocation2 + $0x10] sm:$0xf]
    %v52 = vld [vmem:[#allocation2 + $0x14] sm:$0xf]
    %v53 = vld [vmem:[#allocation2 + $0x18] sm:$0xf]
    %v54 = vld [vmem:[#allocation2 + $0x1c] sm:$0xf]
    %v55 = vld [vmem:[#allocation2 + $0x20] sm:$0xf]
    %v56 = vld [vmem:[#allocation2 + $0x24] sm:$0xf]
    %v57 = vld [vmem:[#allocation2 + $0x28] sm:$0xf]
    %v58 = vld [vmem:[#allocation2 + $0x2c] sm:$0xf]
    %v59 = vld [vmem:[#allocation2 + $0x30] sm:$0xf]
    %v60 = vld [vmem:[#allocation2 + $0x34] sm:$0xf]
    %v61 = vld [vmem:[#allocation2 + $0x38] sm:$0xf]
    %v62 = vld [vmem:[#allocation2 + $0x3c] sm:$0xf]
    %v63 = vld [vmem:[#allocation5] sm:$0xf]
    %v64 = vld [vmem:[#allocation5 + $0x4] sm:$0xf]
    %v65 = vld [vmem:[#allocation5 + $0x8] sm:$0xf]
    %v66 = vld [vmem:[#allocation5 + $0xc] sm:$0xf]
    %v67 = vld [vmem:[#allocation5 + $0x10] sm:$0xf]
    %v68 = vld [vmem:[#allocation5 + $0x14] sm:$0xf]
    %v69 = vld [vmem:[#allocation5 + $0x18] sm:$0xf]
    %v70 = vld [vmem:[#allocation5 + $0x1c] sm:$0xf]
    %v71 = vld [vmem:[#allocation5 + $0x20] sm:$0xf]
    %v72 = vld [vmem:[#allocation5 + $0x24] sm:$0xf]
    %v73 = vld [vmem:[#allocation5 + $0x28] sm:$0xf]
    %v74 = vld [vmem:[#allocation5 + $0x2c] sm:$0xf]
    %v75 = vld [vmem:[#allocation5 + $0x30] sm:$0xf]
    %v76 = vld [vmem:[#allocation5 + $0x34] sm:$0xf]
    %v77 = vld [vmem:[#allocation5 + $0x38] sm:$0xf]
    %v78 = vld [vmem:[#allocation5 + $0x3c] sm:$0xf]
    %v79 = vld [vmem:[%s2] sm:$0x1]
    %v81 = vperm.slane %v79, 0
    %v99 = vunpack.c.l.b16 %v47
    %v100 = vunpack.c.l.b16 %v48
    %v101 = vunpack.c.l.b16 %v49
    %v102 = vunpack.c.l.b16 %v50
    %v103 = vunpack.c.l.b16 %v51
    %v104 = vunpack.c.l.b16 %v52
    %v105 = vunpack.c.l.b16 %v53
    %v106 = vunpack.c.l.b16 %v54
    %v107 = vunpack.c.l.b16 %v55
    %v108 = vunpack.c.l.b16 %v56
    %v109 = vunpack.c.l.b16 %v57
    %v110 = vunpack.c.l.b16 %v58
    %v111 = vunpack.c.l.b16 %v59
    %v112 = vunpack.c.l.b16 %v60
    %v113 = vunpack.c.l.b16 %v61
    %v114 = vunpack.c.l.b16 %v62
    %v115 = vpack.c.b16 %v100, %v99
    %v116 = vpack.c.b16 %v102, %v101
    %v117 = vpack.c.b16 %v104, %v103
    %v118 = vpack.c.b16 %v106, %v105
    %v119 = vpack.c.b16 %v108, %v107
    %v120 = vpack.c.b16 %v110, %v109
    %v121 = vpack.c.b16 %v112, %v111
    %v122 = vpack.c.b16 %v114, %v113
    %v147 = vunpack.c.l.b16 %v63
    %v148 = vunpack.c.l.b16 %v64
    %v149 = vunpack.c.l.b16 %v65
    %v150 = vunpack.c.l.b16 %v66
    %v151 = vunpack.c.l.b16 %v67
    %v152 = vunpack.c.l.b16 %v68
    %v153 = vunpack.c.l.b16 %v69
    %v154 = vunpack.c.l.b16 %v70
    %v155 = vunpack.c.l.b16 %v71
    %v156 = vunpack.c.l.b16 %v72
    %v157 = vunpack.c.l.b16 %v73
    %v158 = vunpack.c.l.b16 %v74
    %v159 = vunpack.c.l.b16 %v75
    %v160 = vunpack.c.l.b16 %v76
    %v161 = vunpack.c.l.b16 %v77
    %v162 = vunpack.c.l.b16 %v78
    %v163 = vpack.c.b16 %v148, %v147
    %v164 = vpack.c.b16 %v150, %v149
    %v165 = vpack.c.b16 %v152, %v151
    %v166 = vpack.c.b16 %v154, %v153
    %v167 = vpack.c.b16 %v156, %v155
    %v168 = vpack.c.b16 %v158, %v157
    %v169 = vpack.c.b16 %v160, %v159
    %v170 = vpack.c.b16 %v162, %v161
    %179 = vmatpush.bf16.msra.mxu0 %v170
    %180 = vmatpush.bf16.msra.mxu0 %v169
    %181 = vmatpush.bf16.msra.mxu0 %v168
    %182 = vmatpush.bf16.msra.mxu0 %v167
    %183 = vmatpush.bf16.msra.mxu0 %v166
    %184 = vmatpush.bf16.msra.mxu0 %v165
    %185 = vmatpush.bf16.msra.mxu0 %v164
    %186 = vmatpush.bf16.msra.mxu0 %v163
    %187 = vmatmul.bf16.gmra.mxu0 %v115
    %v188 = vpop.f32.mrf.mxu0
    %v189 = vadd.f32 %v81, %v188
    %v190 = vpop.f32.mrf.mxu0
    %v191 = vadd.f32 %v81, %v190
    %192 = vmatmul.bf16.gmra.mxu0 %v116
    %v193 = vpop.f32.mrf.mxu0
    %v194 = vadd.f32 %v81, %v193
    %v195 = vpop.f32.mrf.mxu0
    %v196 = vadd.f32 %v81, %v195
    %197 = vmatmul.bf16.gmra.mxu0 %v117
    %v198 = vpop.f32.mrf.mxu0
    %v199 = vadd.f32 %v81, %v198
    %v200 = vpop.f32.mrf.mxu0
    %v201 = vadd.f32 %v81, %v200
    %202 = vmatmul.bf16.gmra.mxu0 %v118
    %v203 = vpop.f32.mrf.mxu0
    %v204 = vadd.f32 %v81, %v203
    %v205 = vpop.f32.mrf.mxu0
    %v206 = vadd.f32 %v81, %v205
    %207 = vmatmul.bf16.gmra.mxu0 %v119
    %v208 = vpop.f32.mrf.mxu0
    %v209 = vadd.f32 %v81, %v208
    %v210 = vpop.f32.mrf.mxu0
    %v211 = vadd.f32 %v81, %v210
    %212 = vmatmul.bf16.gmra.mxu0 %v120
    %v213 = vpop.f32.mrf.mxu0
    %v214 = vadd.f32 %v81, %v213
    %v215 = vpop.f32.mrf.mxu0
    %v216 = vadd.f32 %v81, %v215
    %217 = vmatmul.bf16.gmra.mxu0 %v121
    %v218 = vpop.f32.mrf.mxu0
    %v219 = vadd.f32 %v81, %v218
    %v220 = vpop.f32.mrf.mxu0
    %v221 = vadd.f32 %v81, %v220
    %222 = vmatmul.bf16.gmra.mxu0 %v122
    %v223 = vpop.f32.mrf.mxu0
    %v224 = vadd.f32 %v81, %v223
    %v225 = vpop.f32.mrf.mxu0
    %v226 = vadd.f32 %v81, %v225
    %227 = vdwg.mxu0
    %v228 = vmax.f32 %v189, 0.0
    %v229 = vmax.f32 %v191, 0.0
    %v230 = vmax.f32 %v194, 0.0
    %v231 = vmax.f32 %v196, 0.0
    %v232 = vmax.f32 %v199, 0.0
    %v233 = vmax.f32 %v201, 0.0
    %v234 = vmax.f32 %v204, 0.0
    %v235 = vmax.f32 %v206, 0.0
    %v236 = vmax.f32 %v209, 0.0
    %v237 = vmax.f32 %v211, 0.0
    %v238 = vmax.f32 %v214, 0.0
    %v239 = vmax.f32 %v216, 0.0
    %v240 = vmax.f32 %v219, 0.0
    %v241 = vmax.f32 %v221, 0.0
    %v242 = vmax.f32 %v224, 0.0
    %v243 = vmax.f32 %v226, 0.0
    %v244 = vpack.c.bf16 %v228, %v228
    %v245 = vpack.c.bf16 %v229, %v229
    %v246 = vpack.c.bf16 %v230, %v230
    %v247 = vpack.c.bf16 %v231, %v231
    %v248 = vpack.c.bf16 %v232, %v232
    %v249 = vpack.c.bf16 %v233, %v233
    %v250 = vpack.c.bf16 %v234, %v234
    %v251 = vpack.c.bf16 %v235, %v235
    %v252 = vpack.c.bf16 %v236, %v236
    %v253 = vpack.c.bf16 %v237, %v237
    %v254 = vpack.c.bf16 %v238, %v238
    %v255 = vpack.c.bf16 %v239, %v239
    %v256 = vpack.c.bf16 %v240, %v240
    %v257 = vpack.c.bf16 %v241, %v241
    %v258 = vpack.c.bf16 %v242, %v242
    %v259 = vpack.c.bf16 %v243, %v243
    %260 = vst [vmem:[#allocation7] sm:$0xf] %v244
    %261 = vst [vmem:[#allocation7 + $0x4] sm:$0xf] %v245
    %262 = vst [vmem:[#allocation7 + $0x8] sm:$0xf] %v246
    %263 = vst [vmem:[#allocation7 + $0xc] sm:$0xf] %v247
    %264 = vst [vmem:[#allocation7 + $0x10] sm:$0xf] %v248
    %265 = vst [vmem:[#allocation7 + $0x14] sm:$0xf] %v249
    %266 = vst [vmem:[#allocation7 + $0x18] sm:$0xf] %v250
    %267 = vst [vmem:[#allocation7 + $0x1c] sm:$0xf] %v251
    %268 = vst [vmem:[#allocation7 + $0x20] sm:$0xf] %v252
    %269 = vst [vmem:[#allocation7 + $0x24] sm:$0xf] %v253
    %270 = vst [vmem:[#allocation7 + $0x28] sm:$0xf] %v254
    %271 = vst [vmem:[#allocation7 + $0x2c] sm:$0xf] %v255
    %272 = vst [vmem:[#allocation7 + $0x30] sm:$0xf] %v256
    %273 = vst [vmem:[#allocation7 + $0x34] sm:$0xf] %v257
    %274 = vst [vmem:[#allocation7 + $0x38] sm:$0xf] %v258
    %275 = vst [vmem:[#allocation7 + $0x3c] sm:$0xf] %v259
    // Predicated region
    $region22: #{tpu_custom_call.1} parent=1 // pred_check
      _
    $region23: #{tpu_custom_call.1} parent=1 // pred_check_branch
      %277 = sbr.rel (0) target = $region25
    $region24: #{tpu_custom_call.1} parent=1 // pred_region
      %279 = vsyncadd [#allocation4], 0
      %s280 = sshll.u32 [#allocation7], 4
      %s281 = int_to_ptr.vmem [resolvable:$true] %s280
      %s282 = sshll.u32 %s3, 4
      %s283 = int_to_ptr.hbm [resolvable:$true] %s282
      %288 = dma.vmem_to_hbm [thread:$0]  %s281, 1024, %s283, [#allocation4], 64, 64, 4
    $region25: #{tpu_custom_call.1} parent=1 // pred_fallthru
      _
    // Predicated region
    $region26: #{tpu_custom_call.1} parent=1 // pred_check
      _
    $region27: #{tpu_custom_call.1} parent=1 // pred_check_branch
      %290 = sbr.rel (0) target = $region29
    $region28: #{tpu_custom_call.1} parent=1 // pred_region
      %292 = dma.done [#allocation4], 1024
    $region29: #{tpu_custom_call.1} parent=1 // pred_fallthru
      _
    %293 = vsyncpa [#allocation3], 1
    %294 = vsyncpa [#allocation6], 1
    %295 = vsyncpa [#allocation4], 1

</llo_original>
